<compile_context>
chip_gen: v7x
topology: tpu7x:2x2x1
jax: 0.10.0
libtpu: 0.0.40
codegen_flags: <defaults>
</compile_context>

<pallas_src>
import functools
import math

import jax
import jax.numpy as jnp
from jax.experimental import pallas as pl
from jax.experimental.pallas import tpu as pltpu

_LANES = 128


def _update_e_kernel(params_ref, e_ref, o_ref, *, hidden_dim):
    # params_ref: SMEM f32[3*H + 1] = [w1(H), b1(H), w2(H), b2(1)]
    # e_ref/o_ref: VMEM (TILE_R, 128) lane-dense tiles of the flattened E.
    e = e_ref[...].astype(jnp.float32)
    acc = jnp.zeros_like(e)
    for j in range(hidden_dim):                 # unrolled: H FMAs + H EUP tanh
        w1_j = params_ref[j]
        b1_j = params_ref[hidden_dim + j]
        w2_j = params_ref[2 * hidden_dim + j]
        h = e * w1_j + b1_j
        s = 0.5 * (jnp.tanh(0.5 * h) + 1.0)     # sigmoid via a single EUP tanh
        acc = acc + w2_j * s
    acc = acc + params_ref[3 * hidden_dim]      # + b2
    o_ref[...] = acc.astype(o_ref.dtype)


def _round_up(x, m):
    return -(-x // m) * m


def update_e(E, w1, b1, w2, b2, *, tile_rows=512):
    """Apply the UpdateE MLP (Linear(1,H) -> sigmoid -> Linear(H,1)) to E.

    With input_dim == 1 the MLP is a per-element map, so E (shape (..., 1)) is
    flattened to a lane-dense (rows, 128) slab, padded, processed in TILE_R-row
    tiles, then trimmed and reshaped back.
    """
    input_dim, hidden_dim = w1.shape
    assert input_dim == 1, "fast path assumes input_dim == 1 (per-element MLP)"
    orig_shape = E.shape
    assert orig_shape[-1] == input_dim

    total = math.prod(orig_shape)
    rows = _round_up(max(1, -(-total // _LANES)), 8)      # sublane multiple
    tile_r = _round_up(min(tile_rows, rows), 8)
    rows_padded = _round_up(rows, tile_r)
    padded_total = rows_padded * _LANES

    flat = E.reshape(-1)
    flat = jnp.pad(flat, (0, padded_total - total))
    e2d = flat.reshape(rows_padded, _LANES)

    params = jnp.concatenate(
        [w1.reshape(-1), b1.reshape(-1), w2.reshape(-1), b2.reshape(-1)]
    ).astype(jnp.float32)

    grid = (rows_padded // tile_r,)
    out2d = pl.pallas_call(
        functools.partial(_update_e_kernel, hidden_dim=hidden_dim),
        out_shape=jax.ShapeDtypeStruct((rows_padded, _LANES), E.dtype),
        grid_spec=pl.GridSpec(
            grid=grid,
            in_specs=[
                pl.BlockSpec(memory_space=pltpu.MemorySpace.SMEM),   # params
                pl.BlockSpec((tile_r, _LANES), lambda i: (i, 0)),    # E tile
            ],
            out_specs=pl.BlockSpec((tile_r, _LANES), lambda i: (i, 0)),
        ),
        compiler_params=pltpu.CompilerParams(
            dimension_semantics=("parallel",),
            vmem_limit_bytes=32 * 1024 * 1024,
        ),
    )(params, e2d)

    return out2d.reshape(-1)[:total].reshape(orig_shape)


def init_update_e_params(key, input_dim=1, hidden_dim=8, dtype=jnp.float32):
    """Deterministic init matching nn.Linear's U(-1/sqrt(fan_in), 1/sqrt(fan_in))."""
    k1, k2, k3, k4 = jax.random.split(key, 4)
    bound1 = 1.0 / jnp.sqrt(jnp.array(input_dim, jnp.float32))
    bound2 = 1.0 / jnp.sqrt(jnp.array(hidden_dim, jnp.float32))
    # Stored transposed relative to torch (out,in) -> (in,out).
    w1 = jax.random.uniform(k1, (input_dim, hidden_dim), dtype,
                            minval=-bound1, maxval=bound1)
    b1 = jax.random.uniform(k2, (1, hidden_dim), dtype,
                            minval=-bound1, maxval=bound1)
    w2 = jax.random.uniform(k3, (hidden_dim, input_dim), dtype,
                            minval=-bound2, maxval=bound2)
    b2 = jax.random.uniform(k4, (1, input_dim), dtype,
                            minval=-bound2, maxval=bound2)
    return w1, b1, w2, b2


def _ref_update_e(E, w1, b1, w2, b2):
    """Pure-JAX reference: Linear -> sigmoid -> Linear."""
    e2d = E.reshape(-1, w1.shape[0]).astype(jnp.float32)
    y = jax.nn.sigmoid(e2d @ w1 + b1) @ w2 + b2
    return y.reshape(E.shape).astype(E.dtype)


if __name__ == "__main__":
    key = jax.random.PRNGKey(0)
    k_param, k_in1, k_in2 = jax.random.split(key, 3)

    input_dim, hidden_dim = 1, 8
    w1, b1, w2, b2 = init_update_e_params(k_param, input_dim, hidden_dim)

    # Small shape matching typical usage: (batch, num_latent, 1).
    E_small = jax.random.normal(k_in1, (2, 16, input_dim), dtype=jnp.float32)
    out_small = jax.block_until_ready(update_e(E_small, w1, b1, w2, b2))
    ref_small = _ref_update_e(E_small, w1, b1, w2, b2)
    assert out_small.shape == E_small.shape
    assert jnp.allclose(out_small, ref_small, atol=1e-5, rtol=1e-5)

    # Second case large enough to exercise >1 grid step (two 512x128 tiles).
    E_big = jax.random.normal(k_in2, (8, 16384, input_dim), dtype=jnp.float32)
    out_big = jax.block_until_ready(update_e(E_big, w1, b1, w2, b2))
    ref_big = _ref_update_e(E_big, w1, b1, w2, b2)
    assert out_big.shape == E_big.shape
    assert jnp.allclose(out_big, ref_big, atol=1e-5, rtol=1e-5)

    print("KERNEL_OK")
</pallas_src>

<mosaic_0001>
module attributes {stable_mosaic.version = 11 : i64} {
  func.func @_update_e_kernel(%arg0: i32, %arg1: memref<25xf32, #tpu.memory_space<smem>>, %arg2: memref<8x128xf32, #tpu.memory_space<vmem>>, %arg3: memref<8x128xf32, #tpu.memory_space<vmem>>) attributes {dimension_semantics = [#tpu.dimension_semantics<parallel>], iteration_bounds = array<i64: 1>, scalar_prefetch = 0 : i64, scratch_operands = 0 : i64, tpu.core_type = #tpu.core_type<tc>, window_params = [{transform_indices = @transform_0, window_bounds = array<i64: 25>}, {transform_indices = @transform_1, window_bounds = array<i64: 8, 128>}, {transform_indices = @transform_2, window_bounds = array<i64: 8, 128>}]} {
    %c0 = arith.constant 0 : index
    %c0_0 = arith.constant 0 : index
    %0 = vector.load %arg2[%c0, %c0_0] : memref<8x128xf32, #tpu.memory_space<vmem>>, vector<8x128xf32>
    %cst = arith.constant 0.000000e+00 : f32
    %1 = vector.broadcast %cst : f32 to vector<8x128xf32>
    %c0_1 = arith.constant 0 : index
    %2 = memref.load %arg1[%c0_1] : memref<25xf32, #tpu.memory_space<smem>>
    %c8 = arith.constant 8 : index
    %3 = memref.load %arg1[%c8] : memref<25xf32, #tpu.memory_space<smem>>
    %c16 = arith.constant 16 : index
    %4 = memref.load %arg1[%c16] : memref<25xf32, #tpu.memory_space<smem>>
    %5 = vector.broadcast %2 : f32 to vector<8x128xf32>
    %6 = arith.mulf %0, %5 : vector<8x128xf32>
    %7 = vector.broadcast %3 : f32 to vector<8x128xf32>
    %8 = arith.addf %6, %7 : vector<8x128xf32>
    %cst_2 = arith.constant 5.000000e-01 : f32
    %9 = vector.broadcast %cst_2 : f32 to vector<8x128xf32>
    %10 = arith.mulf %9, %8 : vector<8x128xf32>
    %11 = math.tanh %10 : vector<8x128xf32>
    %cst_3 = arith.constant 1.000000e+00 : f32
    %12 = vector.broadcast %cst_3 : f32 to vector<8x128xf32>
    %13 = arith.addf %11, %12 : vector<8x128xf32>
    %cst_4 = arith.constant 5.000000e-01 : f32
    %14 = vector.broadcast %cst_4 : f32 to vector<8x128xf32>
    %15 = arith.mulf %14, %13 : vector<8x128xf32>
    %16 = vector.broadcast %4 : f32 to vector<8x128xf32>
    %17 = arith.mulf %16, %15 : vector<8x128xf32>
    %18 = arith.addf %1, %17 : vector<8x128xf32>
    %c1 = arith.constant 1 : index
    %19 = memref.load %arg1[%c1] : memref<25xf32, #tpu.memory_space<smem>>
    %c9 = arith.constant 9 : index
    %20 = memref.load %arg1[%c9] : memref<25xf32, #tpu.memory_space<smem>>
    %c17 = arith.constant 17 : index
    %21 = memref.load %arg1[%c17] : memref<25xf32, #tpu.memory_space<smem>>
    %22 = vector.broadcast %19 : f32 to vector<8x128xf32>
    %23 = arith.mulf %0, %22 : vector<8x128xf32>
    %24 = vector.broadcast %20 : f32 to vector<8x128xf32>
    %25 = arith.addf %23, %24 : vector<8x128xf32>
    %cst_5 = arith.constant 5.000000e-01 : f32
    %26 = vector.broadcast %cst_5 : f32 to vector<8x128xf32>
    %27 = arith.mulf %26, %25 : vector<8x128xf32>
    %28 = math.tanh %27 : vector<8x128xf32>
    %cst_6 = arith.constant 1.000000e+00 : f32
    %29 = vector.broadcast %cst_6 : f32 to vector<8x128xf32>
    %30 = arith.addf %28, %29 : vector<8x128xf32>
    %cst_7 = arith.constant 5.000000e-01 : f32
    %31 = vector.broadcast %cst_7 : f32 to vector<8x128xf32>
    %32 = arith.mulf %31, %30 : vector<8x128xf32>
    %33 = vector.broadcast %21 : f32 to vector<8x128xf32>
    %34 = arith.mulf %33, %32 : vector<8x128xf32>
    %35 = arith.addf %18, %34 : vector<8x128xf32>
    %c2 = arith.constant 2 : index
    %36 = memref.load %arg1[%c2] : memref<25xf32, #tpu.memory_space<smem>>
    %c10 = arith.constant 10 : index
    %37 = memref.load %arg1[%c10] : memref<25xf32, #tpu.memory_space<smem>>
    %c18 = arith.constant 18 : index
    %38 = memref.load %arg1[%c18] : memref<25xf32, #tpu.memory_space<smem>>
    %39 = vector.broadcast %36 : f32 to vector<8x128xf32>
    %40 = arith.mulf %0, %39 : vector<8x128xf32>
    %41 = vector.broadcast %37 : f32 to vector<8x128xf32>
    %42 = arith.addf %40, %41 : vector<8x128xf32>
    %cst_8 = arith.constant 5.000000e-01 : f32
    %43 = vector.broadcast %cst_8 : f32 to vector<8x128xf32>
    %44 = arith.mulf %43, %42 : vector<8x128xf32>
    %45 = math.tanh %44 : vector<8x128xf32>
    %cst_9 = arith.constant 1.000000e+00 : f32
    %46 = vector.broadcast %cst_9 : f32 to vector<8x128xf32>
    %47 = arith.addf %45, %46 : vector<8x128xf32>
    %cst_10 = arith.constant 5.000000e-01 : f32
    %48 = vector.broadcast %cst_10 : f32 to vector<8x128xf32>
    %49 = arith.mulf %48, %47 : vector<8x128xf32>
    %50 = vector.broadcast %38 : f32 to vector<8x128xf32>
    %51 = arith.mulf %50, %49 : vector<8x128xf32>
    %52 = arith.addf %35, %51 : vector<8x128xf32>
    %c3 = arith.constant 3 : index
    %53 = memref.load %arg1[%c3] : memref<25xf32, #tpu.memory_space<smem>>
    %c11 = arith.constant 11 : index
    %54 = memref.load %arg1[%c11] : memref<25xf32, #tpu.memory_space<smem>>
    %c19 = arith.constant 19 : index
    %55 = memref.load %arg1[%c19] : memref<25xf32, #tpu.memory_space<smem>>
    %56 = vector.broadcast %53 : f32 to vector<8x128xf32>
    %57 = arith.mulf %0, %56 : vector<8x128xf32>
    %58 = vector.broadcast %54 : f32 to vector<8x128xf32>
    %59 = arith.addf %57, %58 : vector<8x128xf32>
    %cst_11 = arith.constant 5.000000e-01 : f32
    %60 = vector.broadcast %cst_11 : f32 to vector<8x128xf32>
    %61 = arith.mulf %60, %59 : vector<8x128xf32>
    %62 = math.tanh %61 : vector<8x128xf32>
    %cst_12 = arith.constant 1.000000e+00 : f32
    %63 = vector.broadcast %cst_12 : f32 to vector<8x128xf32>
    %64 = arith.addf %62, %63 : vector<8x128xf32>
    %cst_13 = arith.constant 5.000000e-01 : f32
    %65 = vector.broadcast %cst_13 : f32 to vector<8x128xf32>
    %66 = arith.mulf %65, %64 : vector<8x128xf32>
    %67 = vector.broadcast %55 : f32 to vector<8x128xf32>
    %68 = arith.mulf %67, %66 : vector<8x128xf32>
    %69 = arith.addf %52, %68 : vector<8x128xf32>
    %c4 = arith.constant 4 : index
    %70 = memref.load %arg1[%c4] : memref<25xf32, #tpu.memory_space<smem>>
    %c12 = arith.constant 12 : index
    %71 = memref.load %arg1[%c12] : memref<25xf32, #tpu.memory_space<smem>>
    %c20 = arith.constant 20 : index
    %72 = memref.load %arg1[%c20] : memref<25xf32, #tpu.memory_space<smem>>
    %73 = vector.broadcast %70 : f32 to vector<8x128xf32>
    %74 = arith.mulf %0, %73 : vector<8x128xf32>
    %75 = vector.broadcast %71 : f32 to vector<8x128xf32>
    %76 = arith.addf %74, %75 : vector<8x128xf32>
    %cst_14 = arith.constant 5.000000e-01 : f32
    %77 = vector.broadcast %cst_14 : f32 to vector<8x128xf32>
    %78 = arith.mulf %77, %76 : vector<8x128xf32>
    %79 = math.tanh %78 : vector<8x128xf32>
    %cst_15 = arith.constant 1.000000e+00 : f32
    %80 = vector.broadcast %cst_15 : f32 to vector<8x128xf32>
    %81 = arith.addf %79, %80 : vector<8x128xf32>
    %cst_16 = arith.constant 5.000000e-01 : f32
    %82 = vector.broadcast %cst_16 : f32 to vector<8x128xf32>
    %83 = arith.mulf %82, %81 : vector<8x128xf32>
    %84 = vector.broadcast %72 : f32 to vector<8x128xf32>
    %85 = arith.mulf %84, %83 : vector<8x128xf32>
    %86 = arith.addf %69, %85 : vector<8x128xf32>
    %c5 = arith.constant 5 : index
    %87 = memref.load %arg1[%c5] : memref<25xf32, #tpu.memory_space<smem>>
    %c13 = arith.constant 13 : index
    %88 = memref.load %arg1[%c13] : memref<25xf32, #tpu.memory_space<smem>>
    %c21 = arith.constant 21 : index
    %89 = memref.load %arg1[%c21] : memref<25xf32, #tpu.memory_space<smem>>
    %90 = vector.broadcast %87 : f32 to vector<8x128xf32>
    %91 = arith.mulf %0, %90 : vector<8x128xf32>
    %92 = vector.broadcast %88 : f32 to vector<8x128xf32>
    %93 = arith.addf %91, %92 : vector<8x128xf32>
    %cst_17 = arith.constant 5.000000e-01 : f32
    %94 = vector.broadcast %cst_17 : f32 to vector<8x128xf32>
    %95 = arith.mulf %94, %93 : vector<8x128xf32>
    %96 = math.tanh %95 : vector<8x128xf32>
    %cst_18 = arith.constant 1.000000e+00 : f32
    %97 = vector.broadcast %cst_18 : f32 to vector<8x128xf32>
    %98 = arith.addf %96, %97 : vector<8x128xf32>
    %cst_19 = arith.constant 5.000000e-01 : f32
    %99 = vector.broadcast %cst_19 : f32 to vector<8x128xf32>
    %100 = arith.mulf %99, %98 : vector<8x128xf32>
    %101 = vector.broadcast %89 : f32 to vector<8x128xf32>
    %102 = arith.mulf %101, %100 : vector<8x128xf32>
    %103 = arith.addf %86, %102 : vector<8x128xf32>
    %c6 = arith.constant 6 : index
    %104 = memref.load %arg1[%c6] : memref<25xf32, #tpu.memory_space<smem>>
    %c14 = arith.constant 14 : index
    %105 = memref.load %arg1[%c14] : memref<25xf32, #tpu.memory_space<smem>>
    %c22 = arith.constant 22 : index
    %106 = memref.load %arg1[%c22] : memref<25xf32, #tpu.memory_space<smem>>
    %107 = vector.broadcast %104 : f32 to vector<8x128xf32>
    %108 = arith.mulf %0, %107 : vector<8x128xf32>
    %109 = vector.broadcast %105 : f32 to vector<8x128xf32>
    %110 = arith.addf %108, %109 : vector<8x128xf32>
    %cst_20 = arith.constant 5.000000e-01 : f32
    %111 = vector.broadcast %cst_20 : f32 to vector<8x128xf32>
    %112 = arith.mulf %111, %110 : vector<8x128xf32>
    %113 = math.tanh %112 : vector<8x128xf32>
    %cst_21 = arith.constant 1.000000e+00 : f32
    %114 = vector.broadcast %cst_21 : f32 to vector<8x128xf32>
    %115 = arith.addf %113, %114 : vector<8x128xf32>
    %cst_22 = arith.constant 5.000000e-01 : f32
    %116 = vector.broadcast %cst_22 : f32 to vector<8x128xf32>
    %117 = arith.mulf %116, %115 : vector<8x128xf32>
    %118 = vector.broadcast %106 : f32 to vector<8x128xf32>
    %119 = arith.mulf %118, %117 : vector<8x128xf32>
    %120 = arith.addf %103, %119 : vector<8x128xf32>
    %c7 = arith.constant 7 : index
    %121 = memref.load %arg1[%c7] : memref<25xf32, #tpu.memory_space<smem>>
    %c15 = arith.constant 15 : index
    %122 = memref.load %arg1[%c15] : memref<25xf32, #tpu.memory_space<smem>>
    %c23 = arith.constant 23 : index
    %123 = memref.load %arg1[%c23] : memref<25xf32, #tpu.memory_space<smem>>
    %124 = vector.broadcast %121 : f32 to vector<8x128xf32>
    %125 = arith.mulf %0, %124 : vector<8x128xf32>
    %126 = vector.broadcast %122 : f32 to vector<8x128xf32>
    %127 = arith.addf %125, %126 : vector<8x128xf32>
    %cst_23 = arith.constant 5.000000e-01 : f32
    %128 = vector.broadcast %cst_23 : f32 to vector<8x128xf32>
    %129 = arith.mulf %128, %127 : vector<8x128xf32>
    %130 = math.tanh %129 : vector<8x128xf32>
    %cst_24 = arith.constant 1.000000e+00 : f32
    %131 = vector.broadcast %cst_24 : f32 to vector<8x128xf32>
    %132 = arith.addf %130, %131 : vector<8x128xf32>
    %cst_25 = arith.constant 5.000000e-01 : f32
    %133 = vector.broadcast %cst_25 : f32 to vector<8x128xf32>
    %134 = arith.mulf %133, %132 : vector<8x128xf32>
    %135 = vector.broadcast %123 : f32 to vector<8x128xf32>
    %136 = arith.mulf %135, %134 : vector<8x128xf32>
    %137 = arith.addf %120, %136 : vector<8x128xf32>
    %c24 = arith.constant 24 : index
    %138 = memref.load %arg1[%c24] : memref<25xf32, #tpu.memory_space<smem>>
    %139 = vector.broadcast %138 : f32 to vector<8x128xf32>
    %140 = arith.addf %137, %139 : vector<8x128xf32>
    %c0_26 = arith.constant 0 : index
    %c0_27 = arith.constant 0 : index
    %141 = vector.load %arg3[%c0_26, %c0_27] : memref<8x128xf32, #tpu.memory_space<vmem>>, vector<8x128xf32>
    tpu.vector_store %arg3[%c0_26, %c0_27], %140 {strides = array<i32>} : memref<8x128xf32, #tpu.memory_space<vmem>>, vector<8x128xf32>,
    return
  }
  func.func @transform_0(%arg0: i32) -> i32 {
    %c0_i32 = arith.constant 0 : i32
    %c0_i32_0 = arith.constant 0 : i32
    return %c0_i32 : i32
  }
  func.func @transform_1(%arg0: i32) -> (i32, i32) {
    %c0_i32 = arith.constant 0 : i32
    %c0_i32_0 = arith.constant 0 : i32
    return %arg0, %c0_i32 : i32, i32
  }
  func.func @transform_2(%arg0: i32) -> (i32, i32) {
    %c0_i32 = arith.constant 0 : i32
    %c0_i32_0 = arith.constant 0 : i32
    return %arg0, %c0_i32 : i32, i32
  }
}

</mosaic_0001>

<llo_original>
// kernel: tpu_custom_call.1
$region0: #{tpu_custom_call.1}
  #allocation0 [shape = 'u32[]', space=smem, size = 0x4, offset = 0x4, fixed_abs, tag = 'smem constant byte address 0x4 - core index']
  #allocation1 [shape = 'u32[144,128]{1,0:T(1,128)}', space=vmem, size = 0x12000, scoped, tag = 'internal scratch']
  %s0 = inlined_call_operand.hbm [shape: f32[25], index: 0, kind: input, shape index: {}]
  %s1 = inlined_call_operand.hbm [shape: f32[8,128], index: 1, kind: input, shape index: {}]
  %s2 = inlined_call_operand.hbm [shape: f32[8,128], index: 2, kind: output, shape index: {}]
  %s3 = sld [smem:[#allocation0]]
  $region26: #{tpu_custom_call.1} parent=0
    _
  %s5 = ssub.s32 1, %s3
  %s6 = scalar_select 0, %s5, %s3
  $region1: #{tpu_custom_call.1} parent=0
    #allocation2 [shape = 'u8[512]{0}', space=smem, size = 0x200, scoped, tag = 'input window, operand 0, single buffered']
    #allocation3 [shape = 's32[1]{0}', space=sflag, size = 0x4, scoped, tag = 'scoped memory for tpu_custom_call.1']
    #allocation4 [shape = 's32[1]{0}', space=sflag, size = 0x4, scoped, tag = 'scoped memory for tpu_custom_call.1']
    #allocation5 [shape = 's32[1]{0}', space=sflag, size = 0x4, scoped, tag = 'scoped memory for tpu_custom_call.1']
    #allocation6 [shape = 'u8[4096]{0}', space=vmem, size = 0x1000, scoped, tag = 'input window, operand 1, single buffered']
    #allocation7 [shape = 'u8[4096]{0}', space=vmem, size = 0x1000, scoped, tag = 'output window, operand 0, single buffered']
    %7 = vsyncpa [#allocation5], 0
    %8 = vsyncpa [#allocation3], 0
    %9 = vsyncpa [#allocation4], 0
    // Predicated region
    $region2: #{tpu_custom_call.1} parent=1 // pred_check
      _
    $region3: #{tpu_custom_call.1} parent=1 // pred_check_branch
      %11 = sbr.rel (0) target = $region5
    $region4: #{tpu_custom_call.1} parent=1 // pred_region
      %s13 = ssub.s32 16, 16
      %14 = vsyncadd [#allocation5], %s13
      %17 = dma.hbm_to_smem %s0, 16, [#allocation2], [#allocation5]
    $region5: #{tpu_custom_call.1} parent=1 // pred_fallthru
      _
    // Predicated region
    $region6: #{tpu_custom_call.1} parent=1 // pred_check
      _
    $region7: #{tpu_custom_call.1} parent=1 // pred_check_branch
      %19 = sbr.rel (0) target = $region9
    $region8: #{tpu_custom_call.1} parent=1 // pred_region
      %s21 = ssub.s32 128, 128
      %22 = vsyncadd [#allocation3], %s21
      %s24 = sshll.u32 [#allocation6], 4
      %s25 = int_to_ptr.vmem [resolvable:$true] %s24
      %27 = dma.hbm_to_vmem [thread:$0]  %s1, 128, %s25, [#allocation3]
    $region9: #{tpu_custom_call.1} parent=1 // pred_fallthru
      _
    // Predicated region
    $region10: #{tpu_custom_call.1} parent=1 // pred_check
      _
    $region11: #{tpu_custom_call.1} parent=1 // pred_check_branch
      %29 = sbr.rel (0) target = $region13
    $region12: #{tpu_custom_call.1} parent=1 // pred_region
      %30 = dma.done [#allocation5], 16
    $region13: #{tpu_custom_call.1} parent=1 // pred_fallthru
      _
    // Predicated region
    $region14: #{tpu_custom_call.1} parent=1 // pred_check
      _
    $region15: #{tpu_custom_call.1} parent=1 // pred_check_branch
      %32 = sbr.rel (0) target = $region17
    $region16: #{tpu_custom_call.1} parent=1 // pred_region
      %33 = dma.done [#allocation3], 128
    $region17: #{tpu_custom_call.1} parent=1 // pred_fallthru
      _
    %34 = sfence
    %v35 = vld [vmem:[#allocation6] sm:$0xff]
    %s36 = sld [smem:[#allocation2]]
    %s37 = sld [smem:[#allocation2 + $0x8]]
    %s38 = sld [smem:[#allocation2 + $0x10]]
    %v39 = vstv %s36
    %v40 = vmul.f32 %v35, %v39
    %v41 = vstv %s37
    %v42 = vadd.f32 %v40, %v41
    %v43 = vmul.f32 %v42, 0.5
    %v44 = vtanh.pop %v43
    %v45 = vadd.f32 %v44, 1.0
    %v46 = vmul.f32 %v45, 0.5
    %v47 = vstv %s38
    %v48 = vmul.f32 %v47, %v46
    %v49 = vadd.f32 %v48, 0.0
    %s50 = sld [smem:[#allocation2 + $0x1]]
    %s51 = sld [smem:[#allocation2 + $0x9]]
    %s52 = sld [smem:[#allocation2 + $0x11]]
    %v53 = vstv %s50
    %v54 = vmul.f32 %v35, %v53
    %v55 = vstv %s51
    %v56 = vadd.f32 %v54, %v55
    %v57 = vmul.f32 %v56, 0.5
    %v58 = vtanh.pop %v57
    %v59 = vadd.f32 %v58, 1.0
    %v60 = vmul.f32 %v59, 0.5
    %v61 = vstv %s52
    %v62 = vmul.f32 %v61, %v60
    %v63 = vadd.f32 %v49, %v62
    %s64 = sld [smem:[#allocation2 + $0x2]]
    %s65 = sld [smem:[#allocation2 + $0xa]]
    %s66 = sld [smem:[#allocation2 + $0x12]]
    %v67 = vstv %s64
    %v68 = vmul.f32 %v35, %v67
    %v69 = vstv %s65
    %v70 = vadd.f32 %v68, %v69
    %v71 = vmul.f32 %v70, 0.5
    %v72 = vtanh.pop %v71
    %v73 = vadd.f32 %v72, 1.0
    %v74 = vmul.f32 %v73, 0.5
    %v75 = vstv %s66
    %v76 = vmul.f32 %v75, %v74
    %v77 = vadd.f32 %v63, %v76
    %s78 = sld [smem:[#allocation2 + $0x3]]
    %s79 = sld [smem:[#allocation2 + $0xb]]
    %s80 = sld [smem:[#allocation2 + $0x13]]
    %v81 = vstv %s78
    %v82 = vmul.f32 %v35, %v81
    %v83 = vstv %s79
    %v84 = vadd.f32 %v82, %v83
    %v85 = vmul.f32 %v84, 0.5
    %v86 = vtanh.pop %v85
    %v87 = vadd.f32 %v86, 1.0
    %v88 = vmul.f32 %v87, 0.5
    %v89 = vstv %s80
    %v90 = vmul.f32 %v89, %v88
    %v91 = vadd.f32 %v77, %v90
    %s92 = sld [smem:[#allocation2 + $0x4]]
    %s93 = sld [smem:[#allocation2 + $0xc]]
    %s94 = sld [smem:[#allocation2 + $0x14]]
    %v95 = vstv %s92
    %v96 = vmul.f32 %v35, %v95
    %v97 = vstv %s93
    %v98 = vadd.f32 %v96, %v97
    %v99 = vmul.f32 %v98, 0.5
    %v100 = vtanh.pop %v99
    %v101 = vadd.f32 %v100, 1.0
    %v102 = vmul.f32 %v101, 0.5
    %v103 = vstv %s94
    %v104 = vmul.f32 %v103, %v102
    %v105 = vadd.f32 %v91, %v104
    %s106 = sld [smem:[#allocation2 + $0x5]]
    %s107 = sld [smem:[#allocation2 + $0xd]]
    %s108 = sld [smem:[#allocation2 + $0x15]]
    %v109 = vstv %s106
    %v110 = vmul.f32 %v35, %v109
    %v111 = vstv %s107
    %v112 = vadd.f32 %v110, %v111
    %v113 = vmul.f32 %v112, 0.5
    %v114 = vtanh.pop %v113
    %v115 = vadd.f32 %v114, 1.0
    %v116 = vmul.f32 %v115, 0.5
    %v117 = vstv %s108
    %v118 = vmul.f32 %v117, %v116
    %v119 = vadd.f32 %v105, %v118
    %s120 = sld [smem:[#allocation2 + $0x6]]
    %s121 = sld [smem:[#allocation2 + $0xe]]
    %s122 = sld [smem:[#allocation2 + $0x16]]
    %v123 = vstv %s120
    %v124 = vmul.f32 %v35, %v123
    %v125 = vstv %s121
    %v126 = vadd.f32 %v124, %v125
    %v127 = vmul.f32 %v126, 0.5
    %v128 = vtanh.pop %v127
    %v129 = vadd.f32 %v128, 1.0
    %v130 = vmul.f32 %v129, 0.5
    %v131 = vstv %s122
    %v132 = vmul.f32 %v131, %v130
    %v133 = vadd.f32 %v119, %v132
    %s134 = sld [smem:[#allocation2 + $0x7]]
    %s135 = sld [smem:[#allocation2 + $0xf]]
    %s136 = sld [smem:[#allocation2 + $0x17]]
    %v137 = vstv %s134
    %v138 = vmul.f32 %v35, %v137
    %v139 = vstv %s135
    %v140 = vadd.f32 %v138, %v139
    %v141 = vmul.f32 %v140, 0.5
    %v142 = vtanh.pop %v141
    %v143 = vadd.f32 %v142, 1.0
    %v144 = vmul.f32 %v143, 0.5
    %v145 = vstv %s136
    %v146 = vmul.f32 %v145, %v144
    %v147 = vadd.f32 %v133, %v146
    %s148 = sld [smem:[#allocation2 + $0x18]]
    %v149 = vstv %s148
    %v150 = vadd.f32 %v147, %v149
    %151 = vst [vmem:[#allocation7] sm:$0xff] %v150
    // Predicated region
    $region18: #{tpu_custom_call.1} parent=1 // pred_check
      _
    $region19: #{tpu_custom_call.1} parent=1 // pred_check_branch
      %153 = sbr.rel (0) target = $region21
    $region20: #{tpu_custom_call.1} parent=1 // pred_region
      %s155 = ssub.s32 128, 128
      %156 = vsyncadd [#allocation4], %s155
      %s158 = sshll.u32 [#allocation7], 4
      %s159 = int_to_ptr.vmem [resolvable:$true] %s158
      %161 = dma.vmem_to_hbm [thread:$0]  %s159, 128, %s2, [#allocation4]
    $region21: #{tpu_custom_call.1} parent=1 // pred_fallthru
      _
    // Predicated region
    $region22: #{tpu_custom_call.1} parent=1 // pred_check
      _
    $region23: #{tpu_custom_call.1} parent=1 // pred_check_branch
      %163 = sbr.rel (0) target = $region25
    $region24: #{tpu_custom_call.1} parent=1 // pred_region
      %164 = dma.done [#allocation4], 128
    $region25: #{tpu_custom_call.1} parent=1 // pred_fallthru
      _
    %165 = vsyncpa [#allocation3], 1
    %166 = vsyncpa [#allocation4], 1
    %167 = vsyncpa [#allocation5], 1

</llo_original>
